<compile_context>
chip_gen: v7x
topology: tpu7x:2x2x1
jax: 0.10.0
libtpu: 0.0.40
codegen_flags: <defaults>
</compile_context>

<pallas_src>
import jax
import jax.numpy as jnp
from jax.experimental import pallas as pl
from jax.experimental.pallas import tpu as pltpu


def _round_up(x, m):
    return ((x + m - 1) // m) * m


def _default_target_tile_bytes():
    """Per-generation block-size target (bytes moved per grid step, per array)."""
    try:
        kind = jax.devices()[0].device_kind.lower()
    except Exception:
        kind = ""
    if "v5 lite" in kind or "v5lite" in kind or "v5e" in kind:
        # v5e: 16 MiB default scoped VMEM; keep the resident footprint modest.
        return 2 << 20
    # v6e / v7x (and unknown/newer): larger blocks amortise the ~0.35 us/step
    # overhead against >= 1.4 TB/s HBM while staying well inside VMEM
    # (4 MiB block -> ~16 MiB resident with in+out double-buffering).
    return 4 << 20


def _vmem_limit_bytes(in_block_bytes, out_block_bytes):
    # Double-buffered input + output blocks, plus headroom for internal scratch.
    resident = 2 * (in_block_bytes + out_block_bytes)
    return int(max(resident + (2 << 20), 16 << 20))


def _transpose2d_kernel(x_ref, o_ref):
    # x_ref: (TN, C) or (N, TC) VMEM tile -> o_ref is its transpose.
    o_ref[...] = x_ref[...].T


def _transpose3d_kernel(x_ref, o_ref):
    # x_ref: (TB, N, C) VMEM tile -> o_ref: (TB, C, N) VMEM tile.
    o_ref[...] = jnp.transpose(x_ref[...], (0, 2, 1))


def reshape_image(x, *, target_tile_bytes=None):
    """x: (B, N, C) with N a perfect square. Returns (B, C, H, W)."""
    B, N, C = x.shape
    H = int(round(N ** 0.5))
    assert H * H == N, "sequence length must be a perfect square"

    if target_tile_bytes is None:
        target_tile_bytes = _default_target_tile_bytes()

    itemsize = jnp.dtype(x.dtype).itemsize
    bytes_per_image = N * C * itemsize
    # Pure data movement: read + write the whole tensor once.
    cost = pl.CostEstimate(
        flops=0,
        transcendentals=0,
        bytes_accessed=2 * B * N * C * itemsize,
    )

    if bytes_per_image > target_tile_bytes and N >= 256:
        # ---- Large images: TB = 1, balanced 128-multiple tiling along N ----
        n_steps = max(2, pl.cdiv(bytes_per_image, target_tile_bytes))
        tn = _round_up(pl.cdiv(N, n_steps), 128)
        # Keep each output-row DMA chunk reasonably large (>= ~2 KiB for f32)
        # without collapsing back to a single (unsplit, one-core) step.
        tn = max(tn, min(512, _round_up(pl.cdiv(N, 2), 128)))
        tn = min(tn, _round_up(N, 128))
        grid = (B, pl.cdiv(N, tn))
        block_bytes = tn * C * itemsize
        out_bcn = pl.pallas_call(
            _transpose2d_kernel,
            out_shape=jax.ShapeDtypeStruct((B, C, N), x.dtype),
            grid_spec=pltpu.PrefetchScalarGridSpec(
                num_scalar_prefetch=0,
                grid=grid,
                in_specs=[pl.BlockSpec((pl.Squeezed(), tn, C),
                                       lambda b, n: (b, n, 0))],
                out_specs=pl.BlockSpec((pl.Squeezed(), C, tn),
                                       lambda b, n: (b, 0, n)),
            ),
            compiler_params=pltpu.CompilerParams(
                dimension_semantics=("parallel", "parallel"),
                vmem_limit_bytes=_vmem_limit_bytes(block_bytes, block_bytes)),
            cost_estimate=cost,
        )(x)
    elif bytes_per_image > target_tile_bytes and C >= 256:
        # ---- Robustness corner: tiny N but very large C -> tile C ----------
        n_steps = max(2, pl.cdiv(bytes_per_image, target_tile_bytes))
        tc = _round_up(pl.cdiv(C, n_steps), 128)
        tc = min(tc, _round_up(C, 128))
        grid = (B, pl.cdiv(C, tc))
        block_bytes = N * tc * itemsize
        out_bcn = pl.pallas_call(
            _transpose2d_kernel,
            out_shape=jax.ShapeDtypeStruct((B, C, N), x.dtype),
            grid_spec=pltpu.PrefetchScalarGridSpec(
                num_scalar_prefetch=0,
                grid=grid,
                in_specs=[pl.BlockSpec((pl.Squeezed(), N, tc),
                                       lambda b, c: (b, 0, c))],
                out_specs=pl.BlockSpec((pl.Squeezed(), tc, N),
                                       lambda b, c: (b, c, 0)),
            ),
            compiler_params=pltpu.CompilerParams(
                dimension_semantics=("parallel", "parallel"),
                vmem_limit_bytes=_vmem_limit_bytes(block_bytes, block_bytes)),
            cost_estimate=cost,
        )(x)
    else:
        # ---- Small images: batch TB images per step, full (N, C) blocks ----
        # Guarantee >= min(B, 4) grid steps so the pipeline can overlap
        # prefetch/writeback with the relayout and v7x's 2nd core gets work.
        min_steps = min(B, 4)
        n_steps = max(min_steps,
                      pl.cdiv(B * bytes_per_image, target_tile_bytes))
        n_steps = min(n_steps, B)
        tb = pl.cdiv(B, n_steps)
        grid = (pl.cdiv(B, tb),)
        block_bytes = tb * bytes_per_image
        out_bcn = pl.pallas_call(
            _transpose3d_kernel,
            out_shape=jax.ShapeDtypeStruct((B, C, N), x.dtype),
            grid_spec=pltpu.PrefetchScalarGridSpec(
                num_scalar_prefetch=0,
                grid=grid,
                in_specs=[pl.BlockSpec((tb, N, C), lambda b: (b, 0, 0))],
                out_specs=pl.BlockSpec((tb, C, N), lambda b: (b, 0, 0)),
            ),
            compiler_params=pltpu.CompilerParams(
                dimension_semantics=("parallel",),
                vmem_limit_bytes=_vmem_limit_bytes(block_bytes, block_bytes)),
            cost_estimate=cost,
        )(x)

    # Glue: (B, C, N) -> (B, C, H, W) is a pure view change.
    return out_bcn.reshape(B, C, H, H)


if __name__ == "__main__":
    key = jax.random.PRNGKey(0)

    # 1) Small-image path (default per-generation target): B images split into
    #    >= min(B, 4) grid steps for pipelining / v7x 2-core split.
    B, Hh, C = 2, 8, 32
    N = Hh * Hh
    x = jax.random.normal(key, (B, N, C), dtype=jnp.float32)
    out = reshape_image(x)
    jax.block_until_ready(out)
    ref = jnp.transpose(x, (0, 2, 1)).reshape(B, C, Hh, Hh)
    assert out.shape == (B, C, Hh, Hh), out.shape
    assert jnp.array_equal(out, ref), "small-image path mismatch"

    # 2) Balanced N-tiled path with lane-dense 128-multiple output blocks and
    #    a ragged (masked) last block, exercised at small size by shrinking
    #    the target tile bytes.  N = 324 -> two blocks of 256 (2nd masked).
    B2, H2, C2 = 1, 18, 128
    N2 = H2 * H2
    x2 = jax.random.normal(jax.random.PRNGKey(1), (B2, N2, C2),
                           dtype=jnp.float32)
    out2 = reshape_image(x2, target_tile_bytes=64 * 1024)
    jax.block_until_ready(out2)
    ref2 = jnp.transpose(x2, (0, 2, 1)).reshape(B2, C2, H2, H2)
    assert out2.shape == (B2, C2, H2, H2), out2.shape
    assert jnp.array_equal(out2, ref2), "N-tiled path mismatch"

    # 3) C-tiled robustness path: tiny N, very large C (would otherwise be one
    #    oversized full-(N, C) block).  N = 64, C = 512 -> two 256-wide C tiles.
    B3, H3, C3 = 1, 8, 512
    N3 = H3 * H3
    x3 = jax.random.normal(jax.random.PRNGKey(2), (B3, N3, C3),
                           dtype=jnp.float32)
    out3 = reshape_image(x3, target_tile_bytes=64 * 1024)
    jax.block_until_ready(out3)
    ref3 = jnp.transpose(x3, (0, 2, 1)).reshape(B3, C3, H3, H3)
    assert out3.shape == (B3, C3, H3, H3), out3.shape
    assert jnp.array_equal(out3, ref3), "C-tiled path mismatch"

    print("KERNEL_OK")
</pallas_src>

<mosaic_0001>
module attributes {stable_mosaic.version = 11 : i64} {
  func.func @_transpose3d_kernel(%arg0: i32, %arg1: memref<1x64x32xf32, #tpu.memory_space<vmem>>, %arg2: memref<1x32x64xf32, #tpu.memory_space<vmem>>) attributes {dimension_semantics = [#tpu.dimension_semantics<parallel>], iteration_bounds = array<i64: 2>, scalar_prefetch = 0 : i64, scratch_operands = 0 : i64, tpu.core_type = #tpu.core_type<tc>, window_params = [{transform_indices = @transform_0, window_bounds = array<i64: 1, 64, 32>}, {transform_indices = @transform_1, window_bounds = array<i64: 1, 32, 64>}]} {
    %c0 = arith.constant 0 : index
    %c0_0 = arith.constant 0 : index
    %c0_1 = arith.constant 0 : index
    %0 = vector.load %arg1[%c0, %c0_0, %c0_1] : memref<1x64x32xf32, #tpu.memory_space<vmem>>, vector<1x64x32xf32>
    %1 = tpu.transpose %0, [0, 2, 1] : vector<1x64x32xf32> -> vector<1x32x64xf32>
    %c0_2 = arith.constant 0 : index
    %c0_3 = arith.constant 0 : index
    %c0_4 = arith.constant 0 : index
    %2 = vector.load %arg2[%c0_2, %c0_3, %c0_4] : memref<1x32x64xf32, #tpu.memory_space<vmem>>, vector<1x32x64xf32>
    tpu.vector_store %arg2[%c0_2, %c0_3, %c0_4], %1 {strides = array<i32>} : memref<1x32x64xf32, #tpu.memory_space<vmem>>, vector<1x32x64xf32>,
    return
  }
  func.func @transform_0(%arg0: i32) -> (i32, i32, i32) {
    %c0_i32 = arith.constant 0 : i32
    %c0_i32_0 = arith.constant 0 : i32
    %c0_i32_1 = arith.constant 0 : i32
    return %arg0, %c0_i32, %c0_i32_0 : i32, i32, i32
  }
  func.func @transform_1(%arg0: i32) -> (i32, i32, i32) {
    %c0_i32 = arith.constant 0 : i32
    %c0_i32_0 = arith.constant 0 : i32
    %c0_i32_1 = arith.constant 0 : i32
    return %arg0, %c0_i32, %c0_i32_0 : i32, i32, i32
  }
}

</mosaic_0001>

<llo_original>
// kernel: tpu_custom_call.1
$region0: #{tpu_custom_call.1}
  #allocation0 [shape = 'u32[]', space=smem, size = 0x4, offset = 0x4, fixed_abs, tag = 'smem constant byte address 0x4 - core index']
  #allocation1 [shape = 'u32[144,128]{1,0:T(1,128)}', space=vmem, size = 0x12000, scoped, tag = 'internal scratch']
  %s0 = inlined_call_operand.vmem [shape: f32[2,64,32], index: 0, kind: input, shape index: {}]
  %s1 = inlined_call_operand.hbm [shape: f32[2,32,64], index: 1, kind: output, shape index: {}]
  %s2 = sld [smem:[#allocation0]]
  $region37: #{tpu_custom_call.1} parent=0
    _
  %s4 = ssub.s32 1, %s2
  %s5 = scalar_select 0, %s4, %s2
  $region1: #{tpu_custom_call.1} parent=0
    #allocation2 [shape = 'u8[32768]{0}', space=vmem, size = 0x8000, scoped, tag = 'output window, operand 0']
    #allocation3 [shape = 's32[2]{0}', space=sflag, size = 0x8, scoped, tag = 'scoped memory for tpu_custom_call.1']
    %6 = vsyncpa [#allocation3], 0
    %s7 = scalar_lea.sflag [#allocation3], 1
    %8 = vsyncpa %s7, 0
    loop: start=0, step=1, limit=4
    $region2: #{tpu_custom_call.1} parent=1 // loop_pre_header
      _
    $region3: #{tpu_custom_call.1} parent=1 // loop_header
      %s10 = sphi 0, %s14
      %p11 = scmp.ge.s32.totalorder %s10, 4
      %s20 = sphi 0, %s22
      %s23 = sphi 0, %s20
      %s24 = sphi 0, %s23
      %s40 = sphi 0, %s24
      %s46 = sphi 0, %s48
      %s49 = sphi 0, %s46
      %s50 = sphi 0, %s49
      %s66 = sphi 0, %s50
    $region4: #{tpu_custom_call.1} parent=1 // loop_header_branch
      %13 = sbr.rel (%p11) target = $region8
    $region5: #{tpu_custom_call.1} parent=1 // loop_body
      %s15 = ssub.s32 %s10, 1
      %s16 = ssub.s32 %s10, 2
      %s17 = sadd.s32 %s10, 1
      %s18 = ssub.s32 %s10, %s17
      %p19 = scmp.eq.s32.totalorder %s18, 0
      %s21 = sadd.s32 %s20, 1
      %s22 = scalar_select %p19, %s20, %s21
      %p25 = pneg %p19
      %p26 = scmp.eq.s32.totalorder %s10, 1
      %p27 = por %p25, %p26
      %p28 = scmp.ne.s32.totalorder %s20, %s23
      %p29 = scmp.eq.s32.totalorder %s10, 0
      %p30 = por %p28, %p29
      %p31 = scmp.ne.s32.totalorder %s20, %s23
      %p32 = scmp.eq.s32.totalorder %s15, 1
      %p33 = por %p31, %p32
      %p34 = scmp.ne.s32.totalorder %s23, %s24
      %p35 = scmp.eq.s32.totalorder %s15, 0
      %p36 = por %p34, %p35
      %p37 = scmp.ne.s32.totalorder %s23, %s24
      %p38 = scmp.eq.s32.totalorder %s16, 1
      %p39 = por %p37, %p38
      %p41 = scmp.ne.s32.totalorder %s24, %s40
      %p42 = scmp.eq.s32.totalorder %s16, 0
      %p43 = por %p41, %p42
      %s44 = ssub.s32 %s10, %s17
      %p45 = scmp.eq.s32.totalorder %s44, 0
      %s47 = sadd.s32 %s46, 1
      %s48 = scalar_select %p45, %s46, %s47
      %p51 = pneg %p45
      %p52 = scmp.eq.s32.totalorder %s10, 1
      %p53 = por %p51, %p52
      %p54 = scmp.ne.s32.totalorder %s46, %s49
      %p55 = scmp.eq.s32.totalorder %s10, 0
      %p56 = por %p54, %p55
      %p57 = scmp.ne.s32.totalorder %s46, %s49
      %p58 = scmp.eq.s32.totalorder %s15, 1
      %p59 = por %p57, %p58
      %p60 = scmp.ne.s32.totalorder %s49, %s50
      %p61 = scmp.eq.s32.totalorder %s15, 0
      %p62 = por %p60, %p61
      %p63 = scmp.ne.s32.totalorder %s49, %s50
      %p64 = scmp.eq.s32.totalorder %s16, 1
      %p65 = por %p63, %p64
      %p67 = scmp.ne.s32.totalorder %s50, %s66
      %p68 = scmp.eq.s32.totalorder %s16, 0
      %p69 = por %p67, %p68
      %p70 = scmp.le.s32.totalorder 1, %s10
      %p71 = scmp.lt.s32.totalorder %s10, 3
      %p72 = pnand %p70, %p71
      %p73 = pneg %p72
      // Predicated region
      $region9: #{tpu_custom_call.1} parent=5 // pred_check
        _
      $region10: #{tpu_custom_call.1} parent=5 // pred_check_branch
        %75 = sbr.rel (%p72) target = $region12
      $region11: #{tpu_custom_call.1} parent=5 // pred_region
        %s76 = ssub.s32 %s10, 1
      $region12: #{tpu_custom_call.1} parent=5 // pred_fallthru
        _
      %p77 = scmp.lt.s32.totalorder %s10, 2
      // Predicated region
      $region13: #{tpu_custom_call.1} parent=5 // pred_check
        %p78 = pneg %p77
      $region14: #{tpu_custom_call.1} parent=5 // pred_check_branch
        %80 = sbr.rel (%p78) target = $region16
      $region15: #{tpu_custom_call.1} parent=5 // pred_region
        // Predicated region
        $region17: #{tpu_custom_call.1} parent=15 // pred_check
          %p81 = pneg %p30
        $region18: #{tpu_custom_call.1} parent=15 // pred_check_branch
          %83 = sbr.rel (%p81) target = $region20
        $region19: #{tpu_custom_call.1} parent=15 // pred_region
          %p84 = scmp.lt.s32.totalorder %s10, 1
          %s85 = scalar_select %p84, %s10, 1
          %s86 = smul.addr %s85, 8
          %s87 = smul.addr %s86, 8
          %s88 = scalar_lea.vmem %s0, %s87
        $region20: #{tpu_custom_call.1} parent=15 // pred_fallthru
          _
      $region16: #{tpu_custom_call.1} parent=5 // pred_fallthru
        _
      %p89 = scmp.le.s32.totalorder 1, %s10
      %p90 = scmp.lt.s32.totalorder %s10, 3
      %p91 = pnand %p89, %p90
      %p92 = pneg %p91
      // Predicated region
      $region21: #{tpu_custom_call.1} parent=5 // pred_check
        _
      $region22: #{tpu_custom_call.1} parent=5 // pred_check_branch
        %94 = sbr.rel (%p91) target = $region24
      $region23: #{tpu_custom_call.1} parent=5 // pred_region
        %s95 = ssub.s32 %s10, 1
        %p96 = scmp.lt.s32.totalorder %s15, 1
        %s97 = scalar_select %p96, %s15, 1
        %s98 = smul.addr %s97, 8
        %s99 = smul.addr %s98, 8
        %s100 = scalar_lea.vmem %s0, %s99
        %p101 = pneg %p36
        %p102 = pneg %p33
        %p103 = pneg %p62
        %p104 = pneg %p59
        %s105 = sand.u32 %s49, 1
        %s106 = scalar_lea.sflag [#allocation3], %s105
        %s107 = sand.u32 %s49, 1
        %s108 = smul.addr %s107, 32
        %s109 = scalar_lea.vmem [#allocation2], %s108
        %p110 = scmp.lt.s32.totalorder %s15, 1
        %s111 = scalar_select %p110, %s15, 1
        %s112 = smul.addr %s111, 8
        %s113 = smul.addr %s112, 8
        %s114 = scalar_lea.vmem %s0, %s113
        %v115 = vld [vmem:[%s114] sm:$0xff]
        %v116 = vld [vmem:[%s114 + $0x8] sm:$0xff]
        %v117 = vld [vmem:[%s114 + $0x10] sm:$0xff]
        %v118 = vld [vmem:[%s114 + $0x18] sm:$0xff]
        %v119 = vld [vmem:[%s114 + $0x20] sm:$0xff]
        %v120 = vld [vmem:[%s114 + $0x28] sm:$0xff]
        %v121 = vld [vmem:[%s114 + $0x30] sm:$0xff]
        %v122 = vld [vmem:[%s114 + $0x38] sm:$0xff]
        %123 = vxpose.xlu0.b32.start [1/16] %v115, 128
        %124 = vxpose.xlu0.b32.cont [2/16] %v116, 128
        %125 = vxpose.xlu0.b32.cont [3/16] %v117, 128
        %126 = vxpose.xlu0.b32.cont [4/16] %v118, 128
        %127 = vxpose.xlu0.b32.cont [5/16] %v119, 128
        %128 = vxpose.xlu0.b32.cont [6/16] %v120, 128
        %129 = vxpose.xlu0.b32.cont [7/16] %v121, 128
        %130 = vxpose.xlu0.b32.cont [8/16] %v122, 128
        %131 = vxpose.xlu0.b32.cont [9/16] 0.0, 128
        %132 = vxpose.xlu0.b32.cont [10/16] 0.0, 128
        %133 = vxpose.xlu0.b32.cont [11/16] 0.0, 128
        %134 = vxpose.xlu0.b32.cont [12/16] 0.0, 128
        %135 = vxpose.xlu0.b32.cont [13/16] 0.0, 128
        %136 = vxpose.xlu0.b32.cont [14/16] 0.0, 128
        %137 = vxpose.xlu0.b32.cont [15/16] 0.0, 128
        %138 = vxpose.xlu0.b32.end [16/16] 0.0, 128
        %v139 = vpop.trf.xlu0
        %v140 = vpop.trf.xlu0
        %v141 = vpop.trf.xlu0
        %v142 = vpop.trf.xlu0
        %v143 = vpop.trf.xlu0
        %v144 = vpop.trf.xlu0
        %v145 = vpop.trf.xlu0
        %v146 = vpop.trf.xlu0
        %v147 = vpop.trf.xlu0
        %v148 = vpop.trf.xlu0
        %v149 = vpop.trf.xlu0
        %v150 = vpop.trf.xlu0
        %v151 = vpop.trf.xlu0
        %v152 = vpop.trf.xlu0
        %v153 = vpop.trf.xlu0
        %v154 = vpop.trf.xlu0
        %vm155 = vcmask 523264
        %156 = vst.msk [vmem:[%s109] sm:$0xff] %vm155, %v139
        %157 = vst.msk [vmem:[%s109 + $0x8] sm:$0xff] %vm155, %v140
        %158 = vst.msk [vmem:[%s109 + $0x10] sm:$0xff] %vm155, %v141
        %159 = vst.msk [vmem:[%s109 + $0x18] sm:$0xff] %vm155, %v142
        %s160 = sand.u32 %s49, 1
        %s161 = scalar_lea.sflag [#allocation3], %s160
        %s162 = sand.u32 %s49, 1
        %s163 = smul.addr %s162, 32
        %s164 = scalar_lea.vmem [#allocation2], %s163
        // Predicated region
        $region25: #{tpu_custom_call.1} parent=23 // pred_check
          %p165 = pneg %p59
        $region26: #{tpu_custom_call.1} parent=23 // pred_check_branch
          %167 = sbr.rel (%p165) target = $region28
        $region27: #{tpu_custom_call.1} parent=23 // pred_region
          %s169 = ssub.s32 512, 512
          %170 = vsyncadd %s161, %s169
          %s171 = smul.addr %s15, 4
          %s172 = smul.addr %s171, 128
          %s173 = scalar_lea.hbm %s1, %s172
          %s174 = sshll.u32 %s164, 4
          %s175 = int_to_ptr.vmem [resolvable:$true] %s174
          %180 = dma.vmem_to_hbm [thread:$0]  %s175, 512, %s173, %s161, 128, 128, 8
        $region28: #{tpu_custom_call.1} parent=23 // pred_fallthru
          _
      $region24: #{tpu_custom_call.1} parent=5 // pred_fallthru
        _
      %p181 = scmp.le.s32.totalorder 2, %s10
      // Predicated region
      $region29: #{tpu_custom_call.1} parent=5 // pred_check
        %p182 = pneg %p181
      $region30: #{tpu_custom_call.1} parent=5 // pred_check_branch
        %184 = sbr.rel (%p182) target = $region32
      $region31: #{tpu_custom_call.1} parent=5 // pred_region
        %s185 = ssub.s32 %s10, 2
        // Predicated region
        $region33: #{tpu_custom_call.1} parent=31 // pred_check
          %p186 = pneg %p65
        $region34: #{tpu_custom_call.1} parent=31 // pred_check_branch
          %188 = sbr.rel (%p186) target = $region36
        $region35: #{tpu_custom_call.1} parent=31 // pred_region
          %s189 = sand.u32 %s50, 1
          %s190 = scalar_lea.sflag [#allocation3], %s189
          %s191 = sand.u32 %s50, 1
          %s192 = smul.addr %s191, 32
          %s193 = scalar_lea.vmem [#allocation2], %s192
          %194 = dma.done %s190, 512
        $region36: #{tpu_custom_call.1} parent=31 // pred_fallthru
          _
      $region32: #{tpu_custom_call.1} parent=5 // pred_fallthru
        _
    $region6: #{tpu_custom_call.1} parent=1 // loop_footer
      %s14 = sadd.s32 1, %s10
    $region7: #{tpu_custom_call.1} parent=1 // loop_footer_branch
      %9 = sbr.rel target = $region3
    $region8: #{tpu_custom_call.1} parent=1 // loop_exit
      _
    %195 = vsyncpa [#allocation3], 1
    %s196 = scalar_lea.sflag [#allocation3], 1
    %197 = vsyncpa %s196, 1

</llo_original>
